<compile_context>
chip_gen: v6e
topology: v6e:2x2x1
jax: 0.10.0
libtpu: 0.0.40
codegen_flags: <defaults>
</compile_context>

<pallas_src>
import functools

import jax
import jax.numpy as jnp
from jax.experimental import pallas as pl
from jax.experimental.pallas import tpu as pltpu

_LANES = 128            # vreg lane width
_MAX_ROW_BLOCK = 1024   # rows-of-128 per grid step (~0.5 MiB per f32 input buffer)


def _expand_binary_labels(labels, label_weights, label_channels):
    """Plain-JAX glue mirroring the torch helper (only used when target is 1-D labels)."""
    n = labels.shape[0]
    valid = (labels >= 1).astype(jnp.float32)
    bin_labels = jax.nn.one_hot(labels - 1, label_channels, dtype=jnp.float32) * valid[:, None]
    bin_label_weights = jnp.broadcast_to(
        label_weights.reshape(-1, 1).astype(jnp.float32), (n, label_channels))
    return bin_labels, bin_label_weights


def _ghmc_stats_kernel(pred_ref, target_ref, lw_ref, out_ref, *, bins):
    """Per-tile GHM statistics.

    Writes a (1, 2*bins+1, 128) block of per-lane partials:
      rows [0, bins)      : count of valid elements whose gradient norm falls in bin i
      rows [bins, 2*bins) : sum of BCE-with-logits over valid elements in bin i
      row  2*bins         : count of valid elements
    """
    pred = pred_ref[...].astype(jnp.float32)
    target = target_ref[...].astype(jnp.float32)
    lw = lw_ref[...].astype(jnp.float32)

    valid = (lw > 0.0).astype(jnp.float32)

    # Share exp(-|x|) between the (numerically stable) sigmoid and the BCE tail.
    e = jnp.exp(-jnp.abs(pred))
    inv = 1.0 / (1.0 + e)                       # exact (approx recip would perturb binning)
    sig = jnp.where(pred >= 0.0, inv, e * inv)

    # Gradient norm and one-shot bin index.  Edges are uniform (i/bins); clamping to
    # bins-1 reproduces the edges[-1] += 1e-6 behaviour for g == 1.0.
    g = jnp.abs(sig - target)
    bin_idx = jnp.minimum((g * bins).astype(jnp.int32), bins - 1)

    # Stable BCE-with-logits, pre-masked by validity (invalid elements get weight 0).
    bce = (jnp.maximum(pred, 0.0) - pred * target + jnp.log1p(e)) * valid

    # Independent per-bin partial reductions along the sublane axis only
    # (no carry chain, no cross-lane reduce inside the kernel).
    for i in range(bins):
        m = bin_idx == i
        out_ref[0, i:i + 1, :] = jnp.sum(jnp.where(m, valid, 0.0), axis=0, keepdims=True)
        out_ref[0, bins + i:bins + i + 1, :] = jnp.sum(
            jnp.where(m, bce, 0.0), axis=0, keepdims=True)
    out_ref[0, 2 * bins:2 * bins + 1, :] = jnp.sum(valid, axis=0, keepdims=True)


def ghmc_loss(pred, target, label_weight, *, bins=10, momentum=0.0,
              use_sigmoid=True, loss_weight=1.0):
    """GHM-C loss (forward), matching GHMC.forward with momentum == 0."""
    if not use_sigmoid:
        raise NotImplementedError("only the sigmoid/BCE variant is supported")
    if momentum > 0:
        # TODO(synk): momentum > 0 needs a persistent EMA acc_sum state; the module
        # default momentum=0 is what is implemented here.
        raise NotImplementedError("momentum > 0 not supported in this kernel")

    if target.ndim != pred.ndim:
        target, label_weight = _expand_binary_labels(target, label_weight, pred.shape[-1])

    def _native(x):
        # Keep narrow native dtypes (cast happens in-kernel); bools -> f32 for safe DMA.
        return x.astype(jnp.float32) if x.dtype == jnp.bool_ else x

    pred, target, label_weight = _native(pred), _native(target), _native(label_weight)

    # Lane-dense layout: flatten everything onto [rows_padded, 128].
    total = pred.size
    rows = -(-total // _LANES)
    row_blk = min(_MAX_ROW_BLOCK, max(8, ((rows + 7) // 8) * 8))
    rows_padded = -(-rows // row_blk) * row_blk
    padded_total = rows_padded * _LANES
    n_tiles = rows_padded // row_blk

    def _to_lane_dense(x):
        x = x.reshape(-1)
        # Padded elements carry label_weight == 0 -> fully ignored by the kernel.
        x = jnp.pad(x, (0, padded_total - total))
        return x.reshape(rows_padded, _LANES)

    pred2 = _to_lane_dense(pred)
    target2 = _to_lane_dense(target)
    lw2 = _to_lane_dense(label_weight)

    in_map = lambda i: (i, 0)
    stats = pl.pallas_call(
        functools.partial(_ghmc_stats_kernel, bins=bins),
        out_shape=jax.ShapeDtypeStruct((n_tiles, 2 * bins + 1, _LANES), jnp.float32),
        grid=(n_tiles,),
        in_specs=[pl.BlockSpec((row_blk, _LANES), in_map),
                  pl.BlockSpec((row_blk, _LANES), in_map),
                  pl.BlockSpec((row_blk, _LANES), in_map)],
        out_specs=pl.BlockSpec((1, 2 * bins + 1, _LANES), lambda i: (i, 0, 0)),
        compiler_params=pltpu.CompilerParams(dimension_semantics=("parallel",)),
    )(pred2, target2, lw2)

    # Tiny (bins,)-sized combine in plain JAX (exact: the GHM weight is constant per bin).
    sums = jnp.sum(stats, axis=(0, 2))          # (2*bins + 1,)
    counts = sums[:bins]
    bce_sums = sums[bins:2 * bins]
    tot = jnp.maximum(sums[2 * bins], 1.0)
    nonempty = counts > 0.0
    n = jnp.sum(nonempty.astype(jnp.float32))
    n_safe = jnp.where(n > 0.0, n, 1.0)
    per_bin = jnp.where(nonempty, (tot / jnp.maximum(counts, 1.0)) * bce_sums, 0.0)
    return jnp.sum(per_bin) / n_safe / tot * loss_weight


def _ghmc_ref(pred, target, label_weight, *, bins=10, loss_weight=1.0):
    """Pure-JAX reference mirroring the PyTorch module (momentum=0)."""
    pred = pred.astype(jnp.float32)
    target = target.astype(jnp.float32)
    lw = label_weight.astype(jnp.float32)
    edges = [i / bins for i in range(bins + 1)]
    edges[-1] += 1e-6
    valid = lw > 0
    tot = jnp.maximum(jnp.sum(valid.astype(jnp.float32)), 1.0)
    g = jnp.abs(jax.nn.sigmoid(pred) - target)
    weights = jnp.zeros_like(pred)
    n = 0.0
    for i in range(bins):
        inds = (g >= edges[i]) & (g < edges[i + 1]) & valid
        num = jnp.sum(inds.astype(jnp.float32))
        weights = jnp.where(inds & (num > 0), tot / jnp.maximum(num, 1.0), weights)
        n = n + (num > 0).astype(jnp.float32)
    weights = weights / jnp.where(n > 0, n, 1.0)
    bce = jnp.maximum(pred, 0.0) - pred * target + jnp.log1p(jnp.exp(-jnp.abs(pred)))
    return jnp.sum(weights * bce) / tot * loss_weight


if __name__ == "__main__":
    key = jax.random.PRNGKey(0)
    k1, k2, k3 = jax.random.split(key, 3)

    batch_num, class_num = 16, 32
    pred = jax.random.normal(k1, (batch_num, class_num), dtype=jnp.float32) * 2.0
    target = (jax.random.uniform(k2, (batch_num, class_num)) > 0.7).astype(jnp.float32)
    label_weight = (jax.random.uniform(k3, (batch_num, class_num)) > 0.1).astype(jnp.float32)

    loss = ghmc_loss(pred, target, label_weight, bins=10, momentum=0.0, loss_weight=1.0)
    loss = jax.block_until_ready(loss)

    ref = jax.block_until_ready(_ghmc_ref(pred, target, label_weight))
    assert jnp.allclose(loss, ref, rtol=1e-4, atol=1e-5), (loss, ref)

    print("KERNEL_OK")
</pallas_src>

<mosaic_0001>
module attributes {stable_mosaic.version = 11 : i64} {
  func.func @_ghmc_stats_kernel(%arg0: i32, %arg1: memref<8x128xf32, #tpu.memory_space<vmem>>, %arg2: memref<8x128xf32, #tpu.memory_space<vmem>>, %arg3: memref<8x128xf32, #tpu.memory_space<vmem>>, %arg4: memref<1x21x128xf32, #tpu.memory_space<vmem>>) attributes {dimension_semantics = [#tpu.dimension_semantics<parallel>], iteration_bounds = array<i64: 1>, scalar_prefetch = 0 : i64, scratch_operands = 0 : i64, tpu.core_type = #tpu.core_type<tc>, window_params = [{transform_indices = @transform_0, window_bounds = array<i64: 8, 128>}, {transform_indices = @transform_1, window_bounds = array<i64: 8, 128>}, {transform_indices = @transform_2, window_bounds = array<i64: 8, 128>}, {transform_indices = @transform_3, window_bounds = array<i64: 1, 21, 128>}]} {
    %c0 = arith.constant 0 : index
    %c0_0 = arith.constant 0 : index
    %0 = vector.load %arg1[%c0, %c0_0] : memref<8x128xf32, #tpu.memory_space<vmem>>, vector<8x128xf32>
    %c0_1 = arith.constant 0 : index
    %c0_2 = arith.constant 0 : index
    %1 = vector.load %arg2[%c0_1, %c0_2] : memref<8x128xf32, #tpu.memory_space<vmem>>, vector<8x128xf32>
    %c0_3 = arith.constant 0 : index
    %c0_4 = arith.constant 0 : index
    %2 = vector.load %arg3[%c0_3, %c0_4] : memref<8x128xf32, #tpu.memory_space<vmem>>, vector<8x128xf32>
    %cst = arith.constant 0.000000e+00 : f32
    %3 = vector.broadcast %cst : f32 to vector<8x128xf32>
    %4 = arith.cmpf ogt, %2, %3 : vector<8x128xf32>
    %5 = arith.extui %4 : vector<8x128xi1> to vector<8x128xi32>
    %6 = arith.sitofp %5 : vector<8x128xi32> to vector<8x128xf32>
    %7 = math.absf %0 : vector<8x128xf32>
    %cst_5 = arith.constant 0.000000e+00 : f32
    %8 = vector.broadcast %cst_5 : f32 to vector<8x128xf32>
    %9 = arith.subf %8, %7 : vector<8x128xf32>
    %10 = math.exp %9 : vector<8x128xf32>
    %cst_6 = arith.constant 1.000000e+00 : f32
    %11 = vector.broadcast %cst_6 : f32 to vector<8x128xf32>
    %12 = arith.addf %11, %10 : vector<8x128xf32>
    %cst_7 = arith.constant 1.000000e+00 : f32
    %13 = vector.broadcast %cst_7 : f32 to vector<8x128xf32>
    %14 = arith.divf %13, %12 : vector<8x128xf32>
    %cst_8 = arith.constant 0.000000e+00 : f32
    %15 = vector.broadcast %cst_8 : f32 to vector<8x128xf32>
    %16 = arith.cmpf oge, %0, %15 : vector<8x128xf32>
    %17 = arith.mulf %10, %14 : vector<8x128xf32>
    %18 = arith.select %16, %14, %17 : vector<8x128xi1>, vector<8x128xf32>
    %19 = arith.subf %18, %1 : vector<8x128xf32>
    %20 = math.absf %19 : vector<8x128xf32>
    %cst_9 = arith.constant 1.000000e+01 : f32
    %21 = vector.broadcast %cst_9 : f32 to vector<8x128xf32>
    %22 = arith.mulf %20, %21 : vector<8x128xf32>
    %23 = arith.fptosi %22 : vector<8x128xf32> to vector<8x128xi32>
    %c9_i32 = arith.constant 9 : i32
    %24 = vector.broadcast %c9_i32 : i32 to vector<8x128xi32>
    %25 = arith.minsi %23, %24 : vector<8x128xi32>
    %cst_10 = arith.constant 0.000000e+00 : f32
    %26 = vector.broadcast %cst_10 : f32 to vector<8x128xf32>
    %27 = arith.maximumf %0, %26 : vector<8x128xf32>
    %28 = arith.mulf %0, %1 : vector<8x128xf32>
    %29 = arith.subf %27, %28 : vector<8x128xf32>
    %30 = math.log1p %10 : vector<8x128xf32>
    %31 = arith.addf %29, %30 : vector<8x128xf32>
    %32 = arith.mulf %31, %6 : vector<8x128xf32>
    %c0_i32 = arith.constant 0 : i32
    %33 = vector.broadcast %c0_i32 : i32 to vector<8x128xi32>
    %34 = arith.cmpi eq, %25, %33 : vector<8x128xi32>
    %cst_11 = arith.constant 0.000000e+00 : f32
    %35 = vector.broadcast %cst_11 : f32 to vector<8x128xf32>
    %36 = arith.select %34, %6, %35 : vector<8x128xi1>, vector<8x128xf32>
    %cst_12 = arith.constant dense<0.000000e+00> : vector<128xf32>
    %37 = vector.multi_reduction <add>, %36, %cst_12 [0] : vector<8x128xf32> to vector<128xf32>
    %38 = vector.shape_cast %37 : vector<128xf32> to vector<1x128xf32>
    %c0_13 = arith.constant 0 : index
    %c0_14 = arith.constant 0 : index
    %c0_15 = arith.constant 0 : index
    %39 = vector.load %arg4[%c0_13, %c0_14, %c0_15] : memref<1x21x128xf32, #tpu.memory_space<vmem>>, vector<1x1x128xf32>
    %40 = vector.shape_cast %39 : vector<1x1x128xf32> to vector<1x128xf32>
    %41 = vector.shape_cast %38 : vector<1x128xf32> to vector<1x1x128xf32>
    tpu.vector_store %arg4[%c0_13, %c0_14, %c0_15], %41 {strides = array<i32>} : memref<1x21x128xf32, #tpu.memory_space<vmem>>, vector<1x1x128xf32>,
    %cst_16 = arith.constant 0.000000e+00 : f32
    %42 = vector.broadcast %cst_16 : f32 to vector<8x128xf32>
    %43 = arith.select %34, %32, %42 : vector<8x128xi1>, vector<8x128xf32>
    %cst_17 = arith.constant dense<0.000000e+00> : vector<128xf32>
    %44 = vector.multi_reduction <add>, %43, %cst_17 [0] : vector<8x128xf32> to vector<128xf32>
    %45 = vector.shape_cast %44 : vector<128xf32> to vector<1x128xf32>
    %c0_18 = arith.constant 0 : index
    %c10 = arith.constant 10 : index
    %c0_19 = arith.constant 0 : index
    %46 = vector.load %arg4[%c0_18, %c10, %c0_19] : memref<1x21x128xf32, #tpu.memory_space<vmem>>, vector<1x1x128xf32>
    %47 = vector.shape_cast %46 : vector<1x1x128xf32> to vector<1x128xf32>
    %48 = vector.shape_cast %45 : vector<1x128xf32> to vector<1x1x128xf32>
    tpu.vector_store %arg4[%c0_18, %c10, %c0_19], %48 {strides = array<i32>} : memref<1x21x128xf32, #tpu.memory_space<vmem>>, vector<1x1x128xf32>,
    %c1_i32 = arith.constant 1 : i32
    %49 = vector.broadcast %c1_i32 : i32 to vector<8x128xi32>
    %50 = arith.cmpi eq, %25, %49 : vector<8x128xi32>
    %cst_20 = arith.constant 0.000000e+00 : f32
    %51 = vector.broadcast %cst_20 : f32 to vector<8x128xf32>
    %52 = arith.select %50, %6, %51 : vector<8x128xi1>, vector<8x128xf32>
    %cst_21 = arith.constant dense<0.000000e+00> : vector<128xf32>
    %53 = vector.multi_reduction <add>, %52, %cst_21 [0] : vector<8x128xf32> to vector<128xf32>
    %54 = vector.shape_cast %53 : vector<128xf32> to vector<1x128xf32>
    %c0_22 = arith.constant 0 : index
    %c1 = arith.constant 1 : index
    %c0_23 = arith.constant 0 : index
    %55 = vector.load %arg4[%c0_22, %c1, %c0_23] : memref<1x21x128xf32, #tpu.memory_space<vmem>>, vector<1x1x128xf32>
    %56 = vector.shape_cast %55 : vector<1x1x128xf32> to vector<1x128xf32>
    %57 = vector.shape_cast %54 : vector<1x128xf32> to vector<1x1x128xf32>
    tpu.vector_store %arg4[%c0_22, %c1, %c0_23], %57 {strides = array<i32>} : memref<1x21x128xf32, #tpu.memory_space<vmem>>, vector<1x1x128xf32>,
    %cst_24 = arith.constant 0.000000e+00 : f32
    %58 = vector.broadcast %cst_24 : f32 to vector<8x128xf32>
    %59 = arith.select %50, %32, %58 : vector<8x128xi1>, vector<8x128xf32>
    %cst_25 = arith.constant dense<0.000000e+00> : vector<128xf32>
    %60 = vector.multi_reduction <add>, %59, %cst_25 [0] : vector<8x128xf32> to vector<128xf32>
    %61 = vector.shape_cast %60 : vector<128xf32> to vector<1x128xf32>
    %c0_26 = arith.constant 0 : index
    %c11 = arith.constant 11 : index
    %c0_27 = arith.constant 0 : index
    %62 = vector.load %arg4[%c0_26, %c11, %c0_27] : memref<1x21x128xf32, #tpu.memory_space<vmem>>, vector<1x1x128xf32>
    %63 = vector.shape_cast %62 : vector<1x1x128xf32> to vector<1x128xf32>
    %64 = vector.shape_cast %61 : vector<1x128xf32> to vector<1x1x128xf32>
    tpu.vector_store %arg4[%c0_26, %c11, %c0_27], %64 {strides = array<i32>} : memref<1x21x128xf32, #tpu.memory_space<vmem>>, vector<1x1x128xf32>,
    %c2_i32 = arith.constant 2 : i32
    %65 = vector.broadcast %c2_i32 : i32 to vector<8x128xi32>
    %66 = arith.cmpi eq, %25, %65 : vector<8x128xi32>
    %cst_28 = arith.constant 0.000000e+00 : f32
    %67 = vector.broadcast %cst_28 : f32 to vector<8x128xf32>
    %68 = arith.select %66, %6, %67 : vector<8x128xi1>, vector<8x128xf32>
    %cst_29 = arith.constant dense<0.000000e+00> : vector<128xf32>
    %69 = vector.multi_reduction <add>, %68, %cst_29 [0] : vector<8x128xf32> to vector<128xf32>
    %70 = vector.shape_cast %69 : vector<128xf32> to vector<1x128xf32>
    %c0_30 = arith.constant 0 : index
    %c2 = arith.constant 2 : index
    %c0_31 = arith.constant 0 : index
    %71 = vector.load %arg4[%c0_30, %c2, %c0_31] : memref<1x21x128xf32, #tpu.memory_space<vmem>>, vector<1x1x128xf32>
    %72 = vector.shape_cast %71 : vector<1x1x128xf32> to vector<1x128xf32>
    %73 = vector.shape_cast %70 : vector<1x128xf32> to vector<1x1x128xf32>
    tpu.vector_store %arg4[%c0_30, %c2, %c0_31], %73 {strides = array<i32>} : memref<1x21x128xf32, #tpu.memory_space<vmem>>, vector<1x1x128xf32>,
    %cst_32 = arith.constant 0.000000e+00 : f32
    %74 = vector.broadcast %cst_32 : f32 to vector<8x128xf32>
    %75 = arith.select %66, %32, %74 : vector<8x128xi1>, vector<8x128xf32>
    %cst_33 = arith.constant dense<0.000000e+00> : vector<128xf32>
    %76 = vector.multi_reduction <add>, %75, %cst_33 [0] : vector<8x128xf32> to vector<128xf32>
    %77 = vector.shape_cast %76 : vector<128xf32> to vector<1x128xf32>
    %c0_34 = arith.constant 0 : index
    %c12 = arith.constant 12 : index
    %c0_35 = arith.constant 0 : index
    %78 = vector.load %arg4[%c0_34, %c12, %c0_35] : memref<1x21x128xf32, #tpu.memory_space<vmem>>, vector<1x1x128xf32>
    %79 = vector.shape_cast %78 : vector<1x1x128xf32> to vector<1x128xf32>
    %80 = vector.shape_cast %77 : vector<1x128xf32> to vector<1x1x128xf32>
    tpu.vector_store %arg4[%c0_34, %c12, %c0_35], %80 {strides = array<i32>} : memref<1x21x128xf32, #tpu.memory_space<vmem>>, vector<1x1x128xf32>,
    %c3_i32 = arith.constant 3 : i32
    %81 = vector.broadcast %c3_i32 : i32 to vector<8x128xi32>
    %82 = arith.cmpi eq, %25, %81 : vector<8x128xi32>
    %cst_36 = arith.constant 0.000000e+00 : f32
    %83 = vector.broadcast %cst_36 : f32 to vector<8x128xf32>
    %84 = arith.select %82, %6, %83 : vector<8x128xi1>, vector<8x128xf32>
    %cst_37 = arith.constant dense<0.000000e+00> : vector<128xf32>
    %85 = vector.multi_reduction <add>, %84, %cst_37 [0] : vector<8x128xf32> to vector<128xf32>
    %86 = vector.shape_cast %85 : vector<128xf32> to vector<1x128xf32>
    %c0_38 = arith.constant 0 : index
    %c3 = arith.constant 3 : index
    %c0_39 = arith.constant 0 : index
    %87 = vector.load %arg4[%c0_38, %c3, %c0_39] : memref<1x21x128xf32, #tpu.memory_space<vmem>>, vector<1x1x128xf32>
    %88 = vector.shape_cast %87 : vector<1x1x128xf32> to vector<1x128xf32>
    %89 = vector.shape_cast %86 : vector<1x128xf32> to vector<1x1x128xf32>
    tpu.vector_store %arg4[%c0_38, %c3, %c0_39], %89 {strides = array<i32>} : memref<1x21x128xf32, #tpu.memory_space<vmem>>, vector<1x1x128xf32>,
    %cst_40 = arith.constant 0.000000e+00 : f32
    %90 = vector.broadcast %cst_40 : f32 to vector<8x128xf32>
    %91 = arith.select %82, %32, %90 : vector<8x128xi1>, vector<8x128xf32>
    %cst_41 = arith.constant dense<0.000000e+00> : vector<128xf32>
    %92 = vector.multi_reduction <add>, %91, %cst_41 [0] : vector<8x128xf32> to vector<128xf32>
    %93 = vector.shape_cast %92 : vector<128xf32> to vector<1x128xf32>
    %c0_42 = arith.constant 0 : index
    %c13 = arith.constant 13 : index
    %c0_43 = arith.constant 0 : index
    %94 = vector.load %arg4[%c0_42, %c13, %c0_43] : memref<1x21x128xf32, #tpu.memory_space<vmem>>, vector<1x1x128xf32>
    %95 = vector.shape_cast %94 : vector<1x1x128xf32> to vector<1x128xf32>
    %96 = vector.shape_cast %93 : vector<1x128xf32> to vector<1x1x128xf32>
    tpu.vector_store %arg4[%c0_42, %c13, %c0_43], %96 {strides = array<i32>} : memref<1x21x128xf32, #tpu.memory_space<vmem>>, vector<1x1x128xf32>,
    %c4_i32 = arith.constant 4 : i32
    %97 = vector.broadcast %c4_i32 : i32 to vector<8x128xi32>
    %98 = arith.cmpi eq, %25, %97 : vector<8x128xi32>
    %cst_44 = arith.constant 0.000000e+00 : f32
    %99 = vector.broadcast %cst_44 : f32 to vector<8x128xf32>
    %100 = arith.select %98, %6, %99 : vector<8x128xi1>, vector<8x128xf32>
    %cst_45 = arith.constant dense<0.000000e+00> : vector<128xf32>
    %101 = vector.multi_reduction <add>, %100, %cst_45 [0] : vector<8x128xf32> to vector<128xf32>
    %102 = vector.shape_cast %101 : vector<128xf32> to vector<1x128xf32>
    %c0_46 = arith.constant 0 : index
    %c4 = arith.constant 4 : index
    %c0_47 = arith.constant 0 : index
    %103 = vector.load %arg4[%c0_46, %c4, %c0_47] : memref<1x21x128xf32, #tpu.memory_space<vmem>>, vector<1x1x128xf32>
    %104 = vector.shape_cast %103 : vector<1x1x128xf32> to vector<1x128xf32>
    %105 = vector.shape_cast %102 : vector<1x128xf32> to vector<1x1x128xf32>
    tpu.vector_store %arg4[%c0_46, %c4, %c0_47], %105 {strides = array<i32>} : memref<1x21x128xf32, #tpu.memory_space<vmem>>, vector<1x1x128xf32>,
    %cst_48 = arith.constant 0.000000e+00 : f32
    %106 = vector.broadcast %cst_48 : f32 to vector<8x128xf32>
    %107 = arith.select %98, %32, %106 : vector<8x128xi1>, vector<8x128xf32>
    %cst_49 = arith.constant dense<0.000000e+00> : vector<128xf32>
    %108 = vector.multi_reduction <add>, %107, %cst_49 [0] : vector<8x128xf32> to vector<128xf32>
    %109 = vector.shape_cast %108 : vector<128xf32> to vector<1x128xf32>
    %c0_50 = arith.constant 0 : index
    %c14 = arith.constant 14 : index
    %c0_51 = arith.constant 0 : index
    %110 = vector.load %arg4[%c0_50, %c14, %c0_51] : memref<1x21x128xf32, #tpu.memory_space<vmem>>, vector<1x1x128xf32>
    %111 = vector.shape_cast %110 : vector<1x1x128xf32> to vector<1x128xf32>
    %112 = vector.shape_cast %109 : vector<1x128xf32> to vector<1x1x128xf32>
    tpu.vector_store %arg4[%c0_50, %c14, %c0_51], %112 {strides = array<i32>} : memref<1x21x128xf32, #tpu.memory_space<vmem>>, vector<1x1x128xf32>,
    %c5_i32 = arith.constant 5 : i32
    %113 = vector.broadcast %c5_i32 : i32 to vector<8x128xi32>
    %114 = arith.cmpi eq, %25, %113 : vector<8x128xi32>
    %cst_52 = arith.constant 0.000000e+00 : f32
    %115 = vector.broadcast %cst_52 : f32 to vector<8x128xf32>
    %116 = arith.select %114, %6, %115 : vector<8x128xi1>, vector<8x128xf32>
    %cst_53 = arith.constant dense<0.000000e+00> : vector<128xf32>
    %117 = vector.multi_reduction <add>, %116, %cst_53 [0] : vector<8x128xf32> to vector<128xf32>
    %118 = vector.shape_cast %117 : vector<128xf32> to vector<1x128xf32>
    %c0_54 = arith.constant 0 : index
    %c5 = arith.constant 5 : index
    %c0_55 = arith.constant 0 : index
    %119 = vector.load %arg4[%c0_54, %c5, %c0_55] : memref<1x21x128xf32, #tpu.memory_space<vmem>>, vector<1x1x128xf32>
    %120 = vector.shape_cast %119 : vector<1x1x128xf32> to vector<1x128xf32>
    %121 = vector.shape_cast %118 : vector<1x128xf32> to vector<1x1x128xf32>
    tpu.vector_store %arg4[%c0_54, %c5, %c0_55], %121 {strides = array<i32>} : memref<1x21x128xf32, #tpu.memory_space<vmem>>, vector<1x1x128xf32>,
    %cst_56 = arith.constant 0.000000e+00 : f32
    %122 = vector.broadcast %cst_56 : f32 to vector<8x128xf32>
    %123 = arith.select %114, %32, %122 : vector<8x128xi1>, vector<8x128xf32>
    %cst_57 = arith.constant dense<0.000000e+00> : vector<128xf32>
    %124 = vector.multi_reduction <add>, %123, %cst_57 [0] : vector<8x128xf32> to vector<128xf32>
    %125 = vector.shape_cast %124 : vector<128xf32> to vector<1x128xf32>
    %c0_58 = arith.constant 0 : index
    %c15 = arith.constant 15 : index
    %c0_59 = arith.constant 0 : index
    %126 = vector.load %arg4[%c0_58, %c15, %c0_59] : memref<1x21x128xf32, #tpu.memory_space<vmem>>, vector<1x1x128xf32>
    %127 = vector.shape_cast %126 : vector<1x1x128xf32> to vector<1x128xf32>
    %128 = vector.shape_cast %125 : vector<1x128xf32> to vector<1x1x128xf32>
    tpu.vector_store %arg4[%c0_58, %c15, %c0_59], %128 {strides = array<i32>} : memref<1x21x128xf32, #tpu.memory_space<vmem>>, vector<1x1x128xf32>,
    %c6_i32 = arith.constant 6 : i32
    %129 = vector.broadcast %c6_i32 : i32 to vector<8x128xi32>
    %130 = arith.cmpi eq, %25, %129 : vector<8x128xi32>
    %cst_60 = arith.constant 0.000000e+00 : f32
    %131 = vector.broadcast %cst_60 : f32 to vector<8x128xf32>
    %132 = arith.select %130, %6, %131 : vector<8x128xi1>, vector<8x128xf32>
    %cst_61 = arith.constant dense<0.000000e+00> : vector<128xf32>
    %133 = vector.multi_reduction <add>, %132, %cst_61 [0] : vector<8x128xf32> to vector<128xf32>
    %134 = vector.shape_cast %133 : vector<128xf32> to vector<1x128xf32>
    %c0_62 = arith.constant 0 : index
    %c6 = arith.constant 6 : index
    %c0_63 = arith.constant 0 : index
    %135 = vector.load %arg4[%c0_62, %c6, %c0_63] : memref<1x21x128xf32, #tpu.memory_space<vmem>>, vector<1x1x128xf32>
    %136 = vector.shape_cast %135 : vector<1x1x128xf32> to vector<1x128xf32>
    %137 = vector.shape_cast %134 : vector<1x128xf32> to vector<1x1x128xf32>
    tpu.vector_store %arg4[%c0_62, %c6, %c0_63], %137 {strides = array<i32>} : memref<1x21x128xf32, #tpu.memory_space<vmem>>, vector<1x1x128xf32>,
    %cst_64 = arith.constant 0.000000e+00 : f32
    %138 = vector.broadcast %cst_64 : f32 to vector<8x128xf32>
    %139 = arith.select %130, %32, %138 : vector<8x128xi1>, vector<8x128xf32>
    %cst_65 = arith.constant dense<0.000000e+00> : vector<128xf32>
    %140 = vector.multi_reduction <add>, %139, %cst_65 [0] : vector<8x128xf32> to vector<128xf32>
    %141 = vector.shape_cast %140 : vector<128xf32> to vector<1x128xf32>
    %c0_66 = arith.constant 0 : index
    %c16 = arith.constant 16 : index
    %c0_67 = arith.constant 0 : index
    %142 = vector.load %arg4[%c0_66, %c16, %c0_67] : memref<1x21x128xf32, #tpu.memory_space<vmem>>, vector<1x1x128xf32>
    %143 = vector.shape_cast %142 : vector<1x1x128xf32> to vector<1x128xf32>
    %144 = vector.shape_cast %141 : vector<1x128xf32> to vector<1x1x128xf32>
    tpu.vector_store %arg4[%c0_66, %c16, %c0_67], %144 {strides = array<i32>} : memref<1x21x128xf32, #tpu.memory_space<vmem>>, vector<1x1x128xf32>,
    %c7_i32 = arith.constant 7 : i32
    %145 = vector.broadcast %c7_i32 : i32 to vector<8x128xi32>
    %146 = arith.cmpi eq, %25, %145 : vector<8x128xi32>
    %cst_68 = arith.constant 0.000000e+00 : f32
    %147 = vector.broadcast %cst_68 : f32 to vector<8x128xf32>
    %148 = arith.select %146, %6, %147 : vector<8x128xi1>, vector<8x128xf32>
    %cst_69 = arith.constant dense<0.000000e+00> : vector<128xf32>
    %149 = vector.multi_reduction <add>, %148, %cst_69 [0] : vector<8x128xf32> to vector<128xf32>
    %150 = vector.shape_cast %149 : vector<128xf32> to vector<1x128xf32>
    %c0_70 = arith.constant 0 : index
    %c7 = arith.constant 7 : index
    %c0_71 = arith.constant 0 : index
    %151 = vector.load %arg4[%c0_70, %c7, %c0_71] : memref<1x21x128xf32, #tpu.memory_space<vmem>>, vector<1x1x128xf32>
    %152 = vector.shape_cast %151 : vector<1x1x128xf32> to vector<1x128xf32>
    %153 = vector.shape_cast %150 : vector<1x128xf32> to vector<1x1x128xf32>
    tpu.vector_store %arg4[%c0_70, %c7, %c0_71], %153 {strides = array<i32>} : memref<1x21x128xf32, #tpu.memory_space<vmem>>, vector<1x1x128xf32>,
    %cst_72 = arith.constant 0.000000e+00 : f32
    %154 = vector.broadcast %cst_72 : f32 to vector<8x128xf32>
    %155 = arith.select %146, %32, %154 : vector<8x128xi1>, vector<8x128xf32>
    %cst_73 = arith.constant dense<0.000000e+00> : vector<128xf32>
    %156 = vector.multi_reduction <add>, %155, %cst_73 [0] : vector<8x128xf32> to vector<128xf32>
    %157 = vector.shape_cast %156 : vector<128xf32> to vector<1x128xf32>
    %c0_74 = arith.constant 0 : index
    %c17 = arith.constant 17 : index
    %c0_75 = arith.constant 0 : index
    %158 = vector.load %arg4[%c0_74, %c17, %c0_75] : memref<1x21x128xf32, #tpu.memory_space<vmem>>, vector<1x1x128xf32>
    %159 = vector.shape_cast %158 : vector<1x1x128xf32> to vector<1x128xf32>
    %160 = vector.shape_cast %157 : vector<1x128xf32> to vector<1x1x128xf32>
    tpu.vector_store %arg4[%c0_74, %c17, %c0_75], %160 {strides = array<i32>} : memref<1x21x128xf32, #tpu.memory_space<vmem>>, vector<1x1x128xf32>,
    %c8_i32 = arith.constant 8 : i32
    %161 = vector.broadcast %c8_i32 : i32 to vector<8x128xi32>
    %162 = arith.cmpi eq, %25, %161 : vector<8x128xi32>
    %cst_76 = arith.constant 0.000000e+00 : f32
    %163 = vector.broadcast %cst_76 : f32 to vector<8x128xf32>
    %164 = arith.select %162, %6, %163 : vector<8x128xi1>, vector<8x128xf32>
    %cst_77 = arith.constant dense<0.000000e+00> : vector<128xf32>
    %165 = vector.multi_reduction <add>, %164, %cst_77 [0] : vector<8x128xf32> to vector<128xf32>
    %166 = vector.shape_cast %165 : vector<128xf32> to vector<1x128xf32>
    %c0_78 = arith.constant 0 : index
    %c8 = arith.constant 8 : index
    %c0_79 = arith.constant 0 : index
    %167 = vector.load %arg4[%c0_78, %c8, %c0_79] : memref<1x21x128xf32, #tpu.memory_space<vmem>>, vector<1x1x128xf32>
    %168 = vector.shape_cast %167 : vector<1x1x128xf32> to vector<1x128xf32>
    %169 = vector.shape_cast %166 : vector<1x128xf32> to vector<1x1x128xf32>
    tpu.vector_store %arg4[%c0_78, %c8, %c0_79], %169 {strides = array<i32>} : memref<1x21x128xf32, #tpu.memory_space<vmem>>, vector<1x1x128xf32>,
    %cst_80 = arith.constant 0.000000e+00 : f32
    %170 = vector.broadcast %cst_80 : f32 to vector<8x128xf32>
    %171 = arith.select %162, %32, %170 : vector<8x128xi1>, vector<8x128xf32>
    %cst_81 = arith.constant dense<0.000000e+00> : vector<128xf32>
    %172 = vector.multi_reduction <add>, %171, %cst_81 [0] : vector<8x128xf32> to vector<128xf32>
    %173 = vector.shape_cast %172 : vector<128xf32> to vector<1x128xf32>
    %c0_82 = arith.constant 0 : index
    %c18 = arith.constant 18 : index
    %c0_83 = arith.constant 0 : index
    %174 = vector.load %arg4[%c0_82, %c18, %c0_83] : memref<1x21x128xf32, #tpu.memory_space<vmem>>, vector<1x1x128xf32>
    %175 = vector.shape_cast %174 : vector<1x1x128xf32> to vector<1x128xf32>
    %176 = vector.shape_cast %173 : vector<1x128xf32> to vector<1x1x128xf32>
    tpu.vector_store %arg4[%c0_82, %c18, %c0_83], %176 {strides = array<i32>} : memref<1x21x128xf32, #tpu.memory_space<vmem>>, vector<1x1x128xf32>,
    %c9_i32_84 = arith.constant 9 : i32
    %177 = vector.broadcast %c9_i32_84 : i32 to vector<8x128xi32>
    %178 = arith.cmpi eq, %25, %177 : vector<8x128xi32>
    %cst_85 = arith.constant 0.000000e+00 : f32
    %179 = vector.broadcast %cst_85 : f32 to vector<8x128xf32>
    %180 = arith.select %178, %6, %179 : vector<8x128xi1>, vector<8x128xf32>
    %cst_86 = arith.constant dense<0.000000e+00> : vector<128xf32>
    %181 = vector.multi_reduction <add>, %180, %cst_86 [0] : vector<8x128xf32> to vector<128xf32>
    %182 = vector.shape_cast %181 : vector<128xf32> to vector<1x128xf32>
    %c0_87 = arith.constant 0 : index
    %c9 = arith.constant 9 : index
    %c0_88 = arith.constant 0 : index
    %183 = vector.load %arg4[%c0_87, %c9, %c0_88] : memref<1x21x128xf32, #tpu.memory_space<vmem>>, vector<1x1x128xf32>
    %184 = vector.shape_cast %183 : vector<1x1x128xf32> to vector<1x128xf32>
    %185 = vector.shape_cast %182 : vector<1x128xf32> to vector<1x1x128xf32>
    tpu.vector_store %arg4[%c0_87, %c9, %c0_88], %185 {strides = array<i32>} : memref<1x21x128xf32, #tpu.memory_space<vmem>>, vector<1x1x128xf32>,
    %cst_89 = arith.constant 0.000000e+00 : f32
    %186 = vector.broadcast %cst_89 : f32 to vector<8x128xf32>
    %187 = arith.select %178, %32, %186 : vector<8x128xi1>, vector<8x128xf32>
    %cst_90 = arith.constant dense<0.000000e+00> : vector<128xf32>
    %188 = vector.multi_reduction <add>, %187, %cst_90 [0] : vector<8x128xf32> to vector<128xf32>
    %189 = vector.shape_cast %188 : vector<128xf32> to vector<1x128xf32>
    %c0_91 = arith.constant 0 : index
    %c19 = arith.constant 19 : index
    %c0_92 = arith.constant 0 : index
    %190 = vector.load %arg4[%c0_91, %c19, %c0_92] : memref<1x21x128xf32, #tpu.memory_space<vmem>>, vector<1x1x128xf32>
    %191 = vector.shape_cast %190 : vector<1x1x128xf32> to vector<1x128xf32>
    %192 = vector.shape_cast %189 : vector<1x128xf32> to vector<1x1x128xf32>
    tpu.vector_store %arg4[%c0_91, %c19, %c0_92], %192 {strides = array<i32>} : memref<1x21x128xf32, #tpu.memory_space<vmem>>, vector<1x1x128xf32>,
    %cst_93 = arith.constant dense<0.000000e+00> : vector<128xf32>
    %193 = vector.multi_reduction <add>, %6, %cst_93 [0] : vector<8x128xf32> to vector<128xf32>
    %194 = vector.shape_cast %193 : vector<128xf32> to vector<1x128xf32>
    %c0_94 = arith.constant 0 : index
    %c20 = arith.constant 20 : index
    %c0_95 = arith.constant 0 : index
    %195 = vector.load %arg4[%c0_94, %c20, %c0_95] : memref<1x21x128xf32, #tpu.memory_space<vmem>>, vector<1x1x128xf32>
    %196 = vector.shape_cast %195 : vector<1x1x128xf32> to vector<1x128xf32>
    %197 = vector.shape_cast %194 : vector<1x128xf32> to vector<1x1x128xf32>
    tpu.vector_store %arg4[%c0_94, %c20, %c0_95], %197 {strides = array<i32>} : memref<1x21x128xf32, #tpu.memory_space<vmem>>, vector<1x1x128xf32>,
    return
  }
  func.func @transform_0(%arg0: i32) -> (i32, i32) {
    %c0_i32 = arith.constant 0 : i32
    %c0_i32_0 = arith.constant 0 : i32
    return %arg0, %c0_i32 : i32, i32
  }
  func.func @transform_1(%arg0: i32) -> (i32, i32) {
    %c0_i32 = arith.constant 0 : i32
    %c0_i32_0 = arith.constant 0 : i32
    return %arg0, %c0_i32 : i32, i32
  }
  func.func @transform_2(%arg0: i32) -> (i32, i32) {
    %c0_i32 = arith.constant 0 : i32
    %c0_i32_0 = arith.constant 0 : i32
    return %arg0, %c0_i32 : i32, i32
  }
  func.func @transform_3(%arg0: i32) -> (i32, i32, i32) {
    %c0_i32 = arith.constant 0 : i32
    %c0_i32_0 = arith.constant 0 : i32
    %c0_i32_1 = arith.constant 0 : i32
    return %arg0, %c0_i32, %c0_i32_0 : i32, i32, i32
  }
}

</mosaic_0001>

<llo_original>
// kernel: tpu_custom_call.1
$region0: #{tpu_custom_call.1}
  #allocation0 [shape = 'u32[]', space=smem, size = 0x4, offset = 0x4, fixed_abs, tag = 'smem constant byte address 0x4 - core index']
  #allocation1 [shape = 'u32[144,128]{1,0:T(1,128)}', space=vmem, size = 0x12000, scoped, tag = 'internal scratch']
  %s0 = inlined_call_operand.hbm [shape: f32[8,128], index: 0, kind: input, shape index: {}]
  %s1 = inlined_call_operand.hbm [shape: f32[8,128], index: 1, kind: input, shape index: {}]
  %s2 = inlined_call_operand.hbm [shape: f32[8,128], index: 2, kind: input, shape index: {}]
  %s3 = inlined_call_operand.vmem [shape: f32[1,21,128], index: 3, kind: output, shape index: {}]
  %s4 = sld [smem:[#allocation0]]
  $region34: #{tpu_custom_call.1} parent=0
    _
  %s6 = ssub.s32 1, %s4
  %s7 = scalar_select 0, %s6, %s4
  $region1: #{tpu_custom_call.1} parent=0
    #allocation2 [shape = 'u8[4096]{0}', space=vmem, size = 0x1000, scoped, tag = 'input window, operand 0, single buffered']
    #allocation3 [shape = 's32[1]{0}', space=sflag, size = 0x4, scoped, tag = 'scoped memory for tpu_custom_call.1']
    #allocation4 [shape = 'u8[4096]{0}', space=vmem, size = 0x1000, scoped, tag = 'input window, operand 1, single buffered']
    #allocation5 [shape = 's32[1]{0}', space=sflag, size = 0x4, scoped, tag = 'scoped memory for tpu_custom_call.1']
    #allocation6 [shape = 'u8[4096]{0}', space=vmem, size = 0x1000, scoped, tag = 'input window, operand 2, single buffered']
    %8 = vsyncpa [#allocation3], 0
    %9 = vsyncpa [#allocation5], 0
    // Predicated region
    $region2: #{tpu_custom_call.1} parent=1 // pred_check
      _
    $region3: #{tpu_custom_call.1} parent=1 // pred_check_branch
      %11 = sbr.rel (0) target = $region5
    $region4: #{tpu_custom_call.1} parent=1 // pred_region
      %s13 = ssub.s32 128, 128
      %14 = vsyncadd [#allocation3], %s13
      %s16 = sshll.u32 [#allocation2], 4
      %s17 = int_to_ptr.vmem [resolvable:$true] %s16
      %19 = dma.hbm_to_vmem [thread:$0]  %s0, 128, %s17, [#allocation3]
    $region5: #{tpu_custom_call.1} parent=1 // pred_fallthru
      _
    // Predicated region
    $region6: #{tpu_custom_call.1} parent=1 // pred_check
      _
    $region7: #{tpu_custom_call.1} parent=1 // pred_check_branch
      %21 = sbr.rel (0) target = $region9
    $region8: #{tpu_custom_call.1} parent=1 // pred_region
      %s23 = ssub.s32 128, 128
      %24 = vsyncadd [#allocation5], %s23
      %s26 = sshll.u32 [#allocation4], 4
      %s27 = int_to_ptr.vmem [resolvable:$true] %s26
      %29 = dma.hbm_to_vmem [thread:$0]  %s1, 128, %s27, [#allocation5]
    $region9: #{tpu_custom_call.1} parent=1 // pred_fallthru
      _
    // Predicated region
    $region10: #{tpu_custom_call.1} parent=1 // pred_check
      _
    $region11: #{tpu_custom_call.1} parent=1 // pred_check_branch
      %31 = sbr.rel (0) target = $region13
    $region12: #{tpu_custom_call.1} parent=1 // pred_region
      %s33 = ssub.s32 128, 128
      %34 = vsyncadd [#allocation5], %s33
      %s36 = sshll.u32 [#allocation6], 4
      %s37 = int_to_ptr.vmem [resolvable:$true] %s36
      %39 = dma.hbm_to_vmem [thread:$0]  %s2, 128, %s37, [#allocation5]
    $region13: #{tpu_custom_call.1} parent=1 // pred_fallthru
      _
    // Predicated region
    $region14: #{tpu_custom_call.1} parent=1 // pred_check
      _
    $region15: #{tpu_custom_call.1} parent=1 // pred_check_branch
      %41 = sbr.rel (0) target = $region17
    $region16: #{tpu_custom_call.1} parent=1 // pred_region
      %42 = dma.done [#allocation3], 128
    $region17: #{tpu_custom_call.1} parent=1 // pred_fallthru
      _
    // Predicated region
    $region18: #{tpu_custom_call.1} parent=1 // pred_check
      _
    $region19: #{tpu_custom_call.1} parent=1 // pred_check_branch
      %44 = sbr.rel (0) target = $region21
    $region20: #{tpu_custom_call.1} parent=1 // pred_region
      %45 = dma.done [#allocation5], 128
    $region21: #{tpu_custom_call.1} parent=1 // pred_fallthru
      _
    // Predicated region
    $region22: #{tpu_custom_call.1} parent=1 // pred_check
      _
    $region23: #{tpu_custom_call.1} parent=1 // pred_check_branch
      %47 = sbr.rel (0) target = $region25
    $region24: #{tpu_custom_call.1} parent=1 // pred_region
      %48 = dma.done [#allocation5], 128
    $region25: #{tpu_custom_call.1} parent=1 // pred_fallthru
      _
    %v49 = vld [vmem:[#allocation2] sm:$0xff]
    %v50 = vld [vmem:[#allocation4] sm:$0xff]
    %v51 = vld [vmem:[#allocation6] sm:$0xff]
    %vm52 = vcmp.gt.f32.partialorder %v51, 0.0
    %v53 = vsel %vm52, 1, 0
    %v54 = vcvt.s32.f32 %v53
    %v55 = vand.u32 2147483647, %v49
    %v56 = vsub.f32 0.0, %v55
    %v57 = vmul.f32 %v56, 1.442695
    %v58 = vpow.pop %v57
    %v59 = vadd.f32 %v58, 1.0
    %v60 = vrcp.pop %v59
    %v61 = vmul.f32 1.0, %v60
    %vm62 = vcmp.ge.f32.partialorder %v49, 0.0
    %v63 = vmul.f32 %v58, %v61
    %v64 = vsel %vm62, %v61, %v63
    %v65 = vsub.f32 %v64, %v50
    %v66 = vand.u32 2147483647, %v65
    %v67 = vmul.f32 %v66, 10.0
    %v68 = vcvt.f32.s32.to.zero.pseudo %v67
    %vm69 = vcmp.lt.s32.totalorder %v68, 9
    %v70 = vsel %vm69, %v68, 9
    %v71 = vmax.f32 %v49, 0.0
    %v72 = vmul.f32 %v49, %v50
    %v73 = vsub.f32 %v71, %v72
    %v74 = vadd.f32 %v58, 1.0
    %v75 = vlog2.pop %v74
    %v76 = vmul.f32 %v75, 0.6931472
    %v77 = vmul.f32 -0.5, %v58
    %v78 = vadd.f32 %v77, 1.0
    %v79 = vmul.f32 %v78, %v58
    %v80 = vand.u32 2147483647, %v58
    %vm81 = vcmp.lt.f32.partialorder %v80, 0.0004427343
    %v82 = vsel %vm81, %v79, %v76
    %v83 = vadd.f32 %v73, %v82
    %v84 = vmul.f32 %v83, %v54
    %vm85 = vcmp.eq.s32.totalorder %v70, 0
    %v86 = vsel %vm85, %v54, 0.0
    %v87 = vrot.slane %v86, 4
    %v88 = vadd.f32 %v86, %v87
    %v89 = vrot.slane %v88, 2
    %v90 = vadd.f32 %v88, %v89
    %v91 = vrot.slane %v90, 1
    %v92 = vadd.f32 %v90, %v91
    %93 = vst [vmem:[%s3] sm:$0x1] %v92
    %v94 = vsel %vm85, %v84, 0.0
    %v95 = vrot.slane %v94, 4
    %v96 = vadd.f32 %v94, %v95
    %v97 = vrot.slane %v96, 2
    %v98 = vadd.f32 %v96, %v97
    %v99 = vrot.slane %v98, 1
    %v100 = vadd.f32 %v98, %v99
    %101 = vst [vmem:[%s3 + $0xa] sm:$0x1] %v100
    %vm102 = vcmp.eq.s32.totalorder %v70, 1
    %v103 = vsel %vm102, %v54, 0.0
    %v104 = vrot.slane %v103, 4
    %v105 = vadd.f32 %v103, %v104
    %v106 = vrot.slane %v105, 2
    %v107 = vadd.f32 %v105, %v106
    %v108 = vrot.slane %v107, 1
    %v109 = vadd.f32 %v107, %v108
    %110 = vst [vmem:[%s3 + $0x1] sm:$0x1] %v109
    %v111 = vsel %vm102, %v84, 0.0
    %v112 = vrot.slane %v111, 4
    %v113 = vadd.f32 %v111, %v112
    %v114 = vrot.slane %v113, 2
    %v115 = vadd.f32 %v113, %v114
    %v116 = vrot.slane %v115, 1
    %v117 = vadd.f32 %v115, %v116
    %118 = vst [vmem:[%s3 + $0xb] sm:$0x1] %v117
    %vm119 = vcmp.eq.s32.totalorder %v70, 2
    %v120 = vsel %vm119, %v54, 0.0
    %v121 = vrot.slane %v120, 4
    %v122 = vadd.f32 %v120, %v121
    %v123 = vrot.slane %v122, 2
    %v124 = vadd.f32 %v122, %v123
    %v125 = vrot.slane %v124, 1
    %v126 = vadd.f32 %v124, %v125
    %127 = vst [vmem:[%s3 + $0x2] sm:$0x1] %v126
    %v128 = vsel %vm119, %v84, 0.0
    %v129 = vrot.slane %v128, 4
    %v130 = vadd.f32 %v128, %v129
    %v131 = vrot.slane %v130, 2
    %v132 = vadd.f32 %v130, %v131
    %v133 = vrot.slane %v132, 1
    %v134 = vadd.f32 %v132, %v133
    %135 = vst [vmem:[%s3 + $0xc] sm:$0x1] %v134
    %vm136 = vcmp.eq.s32.totalorder %v70, 3
    %v137 = vsel %vm136, %v54, 0.0
    %v138 = vrot.slane %v137, 4
    %v139 = vadd.f32 %v137, %v138
    %v140 = vrot.slane %v139, 2
    %v141 = vadd.f32 %v139, %v140
    %v142 = vrot.slane %v141, 1
    %v143 = vadd.f32 %v141, %v142
    %144 = vst [vmem:[%s3 + $0x3] sm:$0x1] %v143
    %v145 = vsel %vm136, %v84, 0.0
    %v146 = vrot.slane %v145, 4
    %v147 = vadd.f32 %v145, %v146
    %v148 = vrot.slane %v147, 2
    %v149 = vadd.f32 %v147, %v148
    %v150 = vrot.slane %v149, 1
    %v151 = vadd.f32 %v149, %v150
    %152 = vst [vmem:[%s3 + $0xd] sm:$0x1] %v151
    %vm153 = vcmp.eq.s32.totalorder %v70, 4
    %v154 = vsel %vm153, %v54, 0.0
    %v155 = vrot.slane %v154, 4
    %v156 = vadd.f32 %v154, %v155
    %v157 = vrot.slane %v156, 2
    %v158 = vadd.f32 %v156, %v157
    %v159 = vrot.slane %v158, 1
    %v160 = vadd.f32 %v158, %v159
    %161 = vst [vmem:[%s3 + $0x4] sm:$0x1] %v160
    %v162 = vsel %vm153, %v84, 0.0
    %v163 = vrot.slane %v162, 4
    %v164 = vadd.f32 %v162, %v163
    %v165 = vrot.slane %v164, 2
    %v166 = vadd.f32 %v164, %v165
    %v167 = vrot.slane %v166, 1
    %v168 = vadd.f32 %v166, %v167
    %169 = vst [vmem:[%s3 + $0xe] sm:$0x1] %v168
    %vm170 = vcmp.eq.s32.totalorder %v70, 5
    %v171 = vsel %vm170, %v54, 0.0
    %v172 = vrot.slane %v171, 4
    %v173 = vadd.f32 %v171, %v172
    %v174 = vrot.slane %v173, 2
    %v175 = vadd.f32 %v173, %v174
    %v176 = vrot.slane %v175, 1
    %v177 = vadd.f32 %v175, %v176
    %178 = vst [vmem:[%s3 + $0x5] sm:$0x1] %v177
    %v179 = vsel %vm170, %v84, 0.0
    %v180 = vrot.slane %v179, 4
    %v181 = vadd.f32 %v179, %v180
    %v182 = vrot.slane %v181, 2
    %v183 = vadd.f32 %v181, %v182
    %v184 = vrot.slane %v183, 1
    %v185 = vadd.f32 %v183, %v184
    %186 = vst [vmem:[%s3 + $0xf] sm:$0x1] %v185
    %vm187 = vcmp.eq.s32.totalorder %v70, 6
    %v188 = vsel %vm187, %v54, 0.0
    %v189 = vrot.slane %v188, 4
    %v190 = vadd.f32 %v188, %v189
    %v191 = vrot.slane %v190, 2
    %v192 = vadd.f32 %v190, %v191
    %v193 = vrot.slane %v192, 1
    %v194 = vadd.f32 %v192, %v193
    %195 = vst [vmem:[%s3 + $0x6] sm:$0x1] %v194
    %v196 = vsel %vm187, %v84, 0.0
    %v197 = vrot.slane %v196, 4
    %v198 = vadd.f32 %v196, %v197
    %v199 = vrot.slane %v198, 2
    %v200 = vadd.f32 %v198, %v199
    %v201 = vrot.slane %v200, 1
    %v202 = vadd.f32 %v200, %v201
    %203 = vst [vmem:[%s3 + $0x10] sm:$0x1] %v202
    %vm204 = vcmp.eq.s32.totalorder %v70, 7
    %v205 = vsel %vm204, %v54, 0.0
    %v206 = vrot.slane %v205, 4
    %v207 = vadd.f32 %v205, %v206
    %v208 = vrot.slane %v207, 2
    %v209 = vadd.f32 %v207, %v208
    %v210 = vrot.slane %v209, 1
    %v211 = vadd.f32 %v209, %v210
    %212 = vst [vmem:[%s3 + $0x7] sm:$0x1] %v211
    %v213 = vsel %vm204, %v84, 0.0
    %v214 = vrot.slane %v213, 4
    %v215 = vadd.f32 %v213, %v214
    %v216 = vrot.slane %v215, 2
    %v217 = vadd.f32 %v215, %v216
    %v218 = vrot.slane %v217, 1
    %v219 = vadd.f32 %v217, %v218
    %220 = vst [vmem:[%s3 + $0x11] sm:$0x1] %v219
    %vm221 = vcmp.eq.s32.totalorder %v70, 8
    %v222 = vsel %vm221, %v54, 0.0
    %v223 = vrot.slane %v222, 4
    %v224 = vadd.f32 %v222, %v223
    %v225 = vrot.slane %v224, 2
    %v226 = vadd.f32 %v224, %v225
    %v227 = vrot.slane %v226, 1
    %v228 = vadd.f32 %v226, %v227
    %229 = vst [vmem:[%s3 + $0x8] sm:$0x1] %v228
    %v230 = vsel %vm221, %v84, 0.0
    %v231 = vrot.slane %v230, 4
    %v232 = vadd.f32 %v230, %v231
    %v233 = vrot.slane %v232, 2
    %v234 = vadd.f32 %v232, %v233
    %v235 = vrot.slane %v234, 1
    %v236 = vadd.f32 %v234, %v235
    %237 = vst [vmem:[%s3 + $0x12] sm:$0x1] %v236
    %vm238 = vcmp.eq.s32.totalorder %v70, 9
    %v239 = vsel %vm238, %v54, 0.0
    %v240 = vrot.slane %v239, 4
    %v241 = vadd.f32 %v239, %v240
    %v242 = vrot.slane %v241, 2
    %v243 = vadd.f32 %v241, %v242
    %v244 = vrot.slane %v243, 1
    %v245 = vadd.f32 %v243, %v244
    %246 = vst [vmem:[%s3 + $0x9] sm:$0x1] %v245
    %v247 = vsel %vm238, %v84, 0.0
    %v248 = vrot.slane %v247, 4
    %v249 = vadd.f32 %v247, %v248
    %v250 = vrot.slane %v249, 2
    %v251 = vadd.f32 %v249, %v250
    %v252 = vrot.slane %v251, 1
    %v253 = vadd.f32 %v251, %v252
    %254 = vst [vmem:[%s3 + $0x13] sm:$0x1] %v253
    %v255 = vrot.slane %v54, 4
    %v256 = vadd.f32 %v54, %v255
    %v257 = vrot.slane %v256, 2
    %v258 = vadd.f32 %v256, %v257
    %v259 = vrot.slane %v258, 1
    %v260 = vadd.f32 %v258, %v259
    %261 = vst [vmem:[%s3 + $0x14] sm:$0x1] %v260
    // Predicated region
    $region26: #{tpu_custom_call.1} parent=1 // pred_check
      _
    $region27: #{tpu_custom_call.1} parent=1 // pred_check_branch
      %263 = sbr.rel (0) target = $region29
    $region28: #{tpu_custom_call.1} parent=1 // pred_region
      _
    $region29: #{tpu_custom_call.1} parent=1 // pred_fallthru
      _
    // Predicated region
    $region30: #{tpu_custom_call.1} parent=1 // pred_check
      _
    $region31: #{tpu_custom_call.1} parent=1 // pred_check_branch
      %265 = sbr.rel (0) target = $region33
    $region32: #{tpu_custom_call.1} parent=1 // pred_region
      _
    $region33: #{tpu_custom_call.1} parent=1 // pred_fallthru
      _
    %266 = vsyncpa [#allocation3], 1
    %267 = vsyncpa [#allocation5], 1

</llo_original>
